<compile_context>
chip_gen: v5e
topology: v5e:2x2
jax: 0.10.0
libtpu: 0.0.40
codegen_flags: <defaults>
</compile_context>

<pallas_src>
import functools

import jax
import jax.numpy as jnp
from jax.experimental import pallas as pl
from jax.experimental.pallas import tpu as pltpu


def _condconv_kernel(x_ref, w_ref, b_ref, m_ref, o_ref, xext_ref, *,
                     K, Wg, HWg_pad, dilation, pad_k, lext, rext,
                     Cout_p, mask_index, mm_dtype):
    """One grid step == one block of `bb` batch samples.

    x_ref    : (bb, Cin_p, HWg_pad)           channel-major input, flat spatial on lanes
    w_ref    : (bb, K*K*Cout_p, Cin_p)        pre-mixed per-sample tap weights (mm_dtype)
    b_ref    : (bb, Cout_p, 1)                pre-mixed per-sample bias (f32)
    m_ref    : (n_masks, HWg_pad)             row-wrap validity masks, one per off_w != 0
    o_ref    : (bb, Cout_p, HWg_pad)          channel-major, lane-dense output
    xext_ref : (bb, Cin_p, lext+HWg_pad+rext) scratch: zero-extended flat input
    """
    bb, cin = x_ref.shape[0], x_ref.shape[1]

    # Zero ONLY the halo slices, every step.  (A one-time @pl.when(pid==0) init
    # would be unsafe: with dimension_semantics=("parallel",) each TensorCore
    # gets its own uninitialised scratch and only one of them sees pid==0.)
    if lext > 0:
        xext_ref[:, :, pl.ds(0, lext)] = jnp.zeros((bb, cin, lext),
                                                   xext_ref.dtype)
    if rext > 0:
        xext_ref[:, :, pl.ds(lext + HWg_pad, rext)] = jnp.zeros(
            (bb, cin, rext), xext_ref.dtype)
    # Interior written exactly once (no redundant zero fill + re-store).
    xext_ref[:, :, pl.ds(lext, HWg_pad)] = x_ref[...]

    w_all = w_ref[...]                        # (bb, K*K*Cout_p, Cin_p) mm_dtype
    masks = m_ref[...]                        # (n_masks, HWg_pad)      f32

    # Per-tap accumulation -- no im2col tensor is ever materialised.  Each tap
    # window is a static lane-offset slice of the zero-extended input; the
    # halo zeros cover vertical out-of-range rows, masks cover horizontal
    # row wrap-around (only needed when off_w != 0).
    acc = None
    for kh in range(K):
        off_h = kh * dilation - pad_k
        for kw in range(K):
            off_w = kw * dilation - pad_k
            t = kh * K + kw
            start = lext + off_h * Wg + off_w                     # static, >= 0
            win = xext_ref[:, :, pl.ds(start, HWg_pad)]           # (bb,Cin_p,HWg_pad) f32
            if off_w != 0:
                mi = mask_index[off_w]
                m = masks[mi:mi + 1, :]                           # (1, HWg_pad)
                win = win * m[None]                               # f32 VPU (v5e-safe)
            w_tap = w_all[:, t * Cout_p:(t + 1) * Cout_p, :]      # (bb,Cout_p,Cin_p)
            # Batched MXU contraction over Cin_p, f32 accumulate.
            d = jnp.einsum('bok,bkn->bon', w_tap, win.astype(mm_dtype),
                           preferred_element_type=jnp.float32)
            acc = d if acc is None else acc + d
    # Bias as a broadcast add on the f32 accumulator; single lane-dense store.
    o_ref[...] = (acc + b_ref[...]).astype(o_ref.dtype)
    # TODO(synk): optional per-kh-row tap grouping (contraction = K*Cin) for
    # better MXU utilisation on v6e/v7x when Cin is small.


def _pick_batch_block(B, per_sample_bytes, budget_bytes):
    """Largest divisor of B whose VMEM footprint fits; prefer >=2 grid steps
    (so both v7x TensorCores get work).  On 1-TC parts the >=2 preference only
    costs ~0.35us of per-step overhead."""
    divisors = [d for d in range(1, B + 1) if B % d == 0]
    fits = [d for d in divisors if d * per_sample_bytes <= budget_bytes] or [1]
    two_step = [d for d in fits if B // d >= 2]
    pool = two_step if two_step else fits
    return max(pool)


def combine_forward(x_nchw, attention, weights, bias=None, *,
                    stride=1, padding=1, dilation=1, groups=1,
                    matmul_dtype=jnp.float32, batch_block=None):
    """Pallas implementation of Combine.forward.

    x_nchw   : (B, Cin, H, W) float32
    attention: (B, N)         float32
    weights  : (N, Cout, Cin // groups, K, K) float32
    bias     : (N, Cout) float32 or None
    returns  : (B, Cout, Hout, Wout) float32
    """
    # TODO(synk): grouped convolution (groups > 1, block-diagonal contraction)
    # is not implemented in this kernel.
    assert groups == 1
    B, Cin, H, W = x_nchw.shape
    N, Cout, Cin_g, K, K2 = weights.shape
    assert K == K2 and Cin_g == Cin

    Hout = (H + 2 * padding - dilation * (K - 1) - 1) // stride + 1
    Wout = (W + 2 * padding - dilation * (K - 1) - 1) // stride + 1

    same_fast = (stride == 1) and (2 * padding == dilation * (K - 1))
    if same_fast:
        # defaults path: no HBM pad pass, halo handled in-kernel.
        Hg, Wg, pad_k = H, W, padding
        x_flat = x_nchw.reshape(B, Cin, Hg * Wg)          # free reshape of NCHW
    else:
        # general fallback: pad once, compute a full-res stride-1 map on the
        # padded grid, subsample in the wrapper.
        Hg, Wg, pad_k = H + 2 * padding, W + 2 * padding, 0
        x_flat = jnp.pad(
            x_nchw, ((0, 0), (0, 0), (padding, padding), (padding, padding))
        ).reshape(B, Cin, Hg * Wg)
    HWg = Hg * Wg

    # --- lane / sublane padding so every load, store and tap slice is dense --
    HWg_pad = ((HWg + 127) // 128) * 128
    Cin_p = ((Cin + 7) // 8) * 8
    Cout_p = ((Cout + 7) // 8) * 8
    if HWg_pad != HWg or Cin_p != Cin:
        x_flat = jnp.pad(x_flat,
                         ((0, 0), (0, Cin_p - Cin), (0, HWg_pad - HWg)))

    # --- expert mixing hoisted out of the kernel: one batched XLA matmul ----
    # (N,O,I,K,K) -> (B,K,K,Cout,Cin): tap-major so the kernel can take static
    # row slices per (kh,kw).  Weights cast early to matmul_dtype (halves their
    # HBM/VMEM when bf16); bias stays f32 and is added on the f32 accumulator.
    w_mixed = jnp.einsum('bn,noihw->bhwoi', attention, weights)
    w_mixed = jnp.pad(w_mixed, ((0, 0), (0, 0), (0, 0),
                                (0, Cout_p - Cout), (0, Cin_p - Cin)))
    w_mixed = w_mixed.reshape(B, K * K * Cout_p, Cin_p).astype(matmul_dtype)

    if bias is None:
        b_mixed = jnp.zeros((B, Cout_p, 1), jnp.float32)
    else:
        b_mixed = jnp.einsum('bn,no->bo', attention, bias)
        b_mixed = jnp.pad(b_mixed, ((0, 0), (0, Cout_p - Cout)))
        b_mixed = b_mixed.reshape(B, Cout_p, 1).astype(jnp.float32)

    # --- row-wrap masks: one row per distinct off_w != 0 (vertical OOB taps
    # are covered by the in-VMEM zero halo, so no per-(kh,kw) mask table) -----
    offws = sorted({kw * dilation - pad_k for kw in range(K)} - {0})
    jj = jnp.arange(HWg_pad, dtype=jnp.int32)
    xx = jj % Wg
    in_image = jj < HWg
    mask_index = {}
    mrows = []
    for i, ow in enumerate(offws):
        mask_index[ow] = i
        xs = xx + ow
        mrows.append(((xs >= 0) & (xs < Wg) & in_image).astype(jnp.float32))
    mask = jnp.stack(mrows) if mrows else jnp.zeros((1, HWg_pad), jnp.float32)
    n_masks = mask.shape[0]

    # --- halo extents for the flat in-VMEM copy ------------------------------
    lext = pad_k * (Wg + 1)
    rext = max(0, ((K - 1) * dilation - pad_k) * (Wg + 1))
    ext_len = lext + HWg_pad + rext

    # --- VMEM budget & batch block (no im2col tensor in the footprint) -------
    f32b = 4
    itw = jnp.dtype(matmul_dtype).itemsize
    per_sample = (f32b * (2 * Cin_p * HWg_pad        # x block, double-buffered
                          + 2 * Cout_p * HWg_pad     # out block, double-buffered
                          + Cin_p * ext_len          # xext scratch
                          + Cout_p * HWg_pad         # live f32 accumulator
                          + 2 * Cin_p * HWg_pad)     # tap-window temporaries
                  + 2 * K * K * Cout_p * Cin_p * itw # w block, double-buffered
                  + 2 * Cout_p * f32b)               # bias block
    fixed = 2 * n_masks * HWg_pad * f32b + (2 << 20)
    try:
        vmem_cap = int(pltpu.get_tpu_info().vmem_capacity_bytes)
    except Exception:
        vmem_cap = 64 << 20
    cap = max(min(int(vmem_cap * 3 // 4), 100 << 20), 32 << 20)

    if batch_block is None:
        bb = _pick_batch_block(B, per_sample, int(cap * 0.85) - fixed)
    else:
        bb = batch_block
    assert B % bb == 0
    grid = (B // bb,)
    vmem_limit = int(min(max(per_sample * bb + fixed, 32 << 20), cap))
    # TODO(synk): for very large H*W add a halo'd spatial (row-tile) grid axis
    # so blocks fit v7x's 64 MiB VMEM and provide a second parallel axis.

    kernel = functools.partial(
        _condconv_kernel, K=K, Wg=Wg, HWg_pad=HWg_pad, dilation=dilation,
        pad_k=pad_k, lext=lext, rext=rext, Cout_p=Cout_p,
        mask_index=mask_index, mm_dtype=matmul_dtype)

    out_flat = pl.pallas_call(
        kernel,
        out_shape=jax.ShapeDtypeStruct((B, Cout_p, HWg_pad), jnp.float32),
        grid=grid,
        in_specs=[
            pl.BlockSpec((bb, Cin_p, HWg_pad), lambda b: (b, 0, 0)),          # x
            pl.BlockSpec((bb, K * K * Cout_p, Cin_p), lambda b: (b, 0, 0)),   # W
            pl.BlockSpec((bb, Cout_p, 1), lambda b: (b, 0, 0)),               # bias
            pl.BlockSpec((n_masks, HWg_pad), lambda b: (0, 0)),               # masks
        ],
        out_specs=pl.BlockSpec((bb, Cout_p, HWg_pad), lambda b: (b, 0, 0)),
        scratch_shapes=[pltpu.VMEM((bb, Cin_p, ext_len), jnp.float32)],
        compiler_params=pltpu.CompilerParams(
            dimension_semantics=("parallel",),
            vmem_limit_bytes=vmem_limit),
    )(x_flat, w_mixed, b_mixed, mask)

    out_flat = out_flat[:, :Cout, :HWg]                  # drop channel/lane pad
    if same_fast:
        return out_flat.reshape(B, Cout, Hout, Wout)     # free reshape
    out_full = out_flat.reshape(B, Cout, Hg, Wg)
    return out_full[:, :, : (Hout - 1) * stride + 1 : stride,
                    : (Wout - 1) * stride + 1 : stride]


def _reference(x_nchw, attention, weights, bias, *, stride, padding, dilation):
    """Pure-JAX reference mirroring the PyTorch forward (per-batch conv)."""
    B = x_nchw.shape[0]
    w_b = jnp.einsum('bn,noihw->boihw', attention, weights)
    b_b = jnp.einsum('bn,no->bo', attention, bias)
    outs = []
    for b in range(B):
        o = jax.lax.conv_general_dilated(
            x_nchw[b:b + 1], w_b[b],
            window_strides=(stride, stride),
            padding=[(padding, padding), (padding, padding)],
            rhs_dilation=(dilation, dilation),
            dimension_numbers=('NCHW', 'OIHW', 'NCHW'))
        outs.append(o + b_b[b][None, :, None, None])
    return jnp.concatenate(outs, axis=0)


if __name__ == "__main__":
    # Small, deterministic problem consistent with the module defaults.
    B, Cin, Cout, H, W = 2, 4, 8, 16, 16
    N_EXPERTS, K = 8, 3
    stride, padding, dilation, groups = 1, 1, 1, 1

    key = jax.random.PRNGKey(0)
    k_x, k_att, k_w, k_b = jax.random.split(key, 4)

    x = jax.random.normal(k_x, (B, Cin, H, W), jnp.float32)
    attention = jax.nn.softmax(
        jax.random.normal(k_att, (B, N_EXPERTS), jnp.float32), axis=-1)
    weights = jax.random.normal(k_w, (N_EXPERTS, Cout, Cin // groups, K, K),
                                jnp.float32)
    bias = jax.random.normal(k_b, (N_EXPERTS, Cout), jnp.float32)

    ref = _reference(x, attention, weights, bias,
                     stride=stride, padding=padding, dilation=dilation)

    # 1) f32 MXU operands (v5e-friendly), tight check.
    out = combine_forward(x, attention, weights, bias,
                          stride=stride, padding=padding,
                          dilation=dilation, groups=groups,
                          matmul_dtype=jnp.float32)
    out = jax.block_until_ready(out)
    assert out.shape == ref.shape == (B, Cout, H, W)
    assert jnp.allclose(out, ref, rtol=2e-4, atol=2e-4), \
        float(jnp.max(jnp.abs(out - ref)))

    # 2) bf16 MXU operands / f32 accumulate (v6e/v7x recommendation), loose check.
    out_bf16 = combine_forward(x, attention, weights, bias,
                               stride=stride, padding=padding,
                               dilation=dilation, groups=groups,
                               matmul_dtype=jnp.bfloat16)
    out_bf16 = jax.block_until_ready(out_bf16)
    assert jnp.allclose(out_bf16, ref, rtol=5e-2, atol=5e-2)

    # 3) general fallback path (stride=2), also exercises lane padding (18*18).
    ref_s2 = _reference(x, attention, weights, bias,
                        stride=2, padding=1, dilation=1)
    out_s2 = combine_forward(x, attention, weights, bias,
                             stride=2, padding=1, dilation=1, groups=1,
                             matmul_dtype=jnp.float32)
    out_s2 = jax.block_until_ready(out_s2)
    assert out_s2.shape == ref_s2.shape
    assert jnp.allclose(out_s2, ref_s2, rtol=2e-4, atol=2e-4)

    print("KERNEL_OK")
</pallas_src>

<mosaic_0001>
module attributes {stable_mosaic.version = 11 : i64} {
  func.func @_condconv_kernel(%arg0: i32, %arg1: memref<1x8x256xf32, #tpu.memory_space<vmem>>, %arg2: memref<1x72x8xf32, #tpu.memory_space<vmem>>, %arg3: memref<1x8x1xf32, #tpu.memory_space<vmem>>, %arg4: memref<2x256xf32, #tpu.memory_space<vmem>>, %arg5: memref<1x8x256xf32, #tpu.memory_space<vmem>>, %arg6: memref<1x8x290xf32, #tpu.memory_space<vmem>>) attributes {dimension_semantics = [#tpu.dimension_semantics<parallel>], iteration_bounds = array<i64: 2>, scalar_prefetch = 0 : i64, scratch_operands = 1 : i64, tpu.core_type = #tpu.core_type<tc>, window_params = [{transform_indices = @transform_0, window_bounds = array<i64: 1, 8, 256>}, {transform_indices = @transform_1, window_bounds = array<i64: 1, 72, 8>}, {transform_indices = @transform_2, window_bounds = array<i64: 1, 8, 1>}, {pipeline_mode = #tpu.pipeline_mode<synchronous>, transform_indices = @transform_3, window_bounds = array<i64: 2, 256>}, {transform_indices = @transform_4, window_bounds = array<i64: 1, 8, 256>}]} {
    %cst = arith.constant 0.000000e+00 : f32
    %0 = vector.broadcast %cst : f32 to vector<1x8x17xf32>
    %c0 = arith.constant 0 : index
    %c0_0 = arith.constant 0 : index
    %c0_1 = arith.constant 0 : index
    %1 = vector.load %arg6[%c0, %c0_0, %c0_1] : memref<1x8x290xf32, #tpu.memory_space<vmem>>, vector<1x8x17xf32>
    tpu.vector_store %arg6[%c0, %c0_0, %c0_1], %0 {strides = array<i32>} : memref<1x8x290xf32, #tpu.memory_space<vmem>>, vector<1x8x17xf32>,
    %cst_2 = arith.constant 0.000000e+00 : f32
    %2 = vector.broadcast %cst_2 : f32 to vector<1x8x17xf32>
    %c0_3 = arith.constant 0 : index
    %c0_4 = arith.constant 0 : index
    %c273 = arith.constant 273 : index
    %3 = vector.load %arg6[%c0_3, %c0_4, %c273] : memref<1x8x290xf32, #tpu.memory_space<vmem>>, vector<1x8x17xf32>
    tpu.vector_store %arg6[%c0_3, %c0_4, %c273], %2 {strides = array<i32>} : memref<1x8x290xf32, #tpu.memory_space<vmem>>, vector<1x8x17xf32>,
    %c0_5 = arith.constant 0 : index
    %c0_6 = arith.constant 0 : index
    %c0_7 = arith.constant 0 : index
    %4 = vector.load %arg1[%c0_5, %c0_6, %c0_7] : memref<1x8x256xf32, #tpu.memory_space<vmem>>, vector<1x8x256xf32>
    %c0_8 = arith.constant 0 : index
    %c0_9 = arith.constant 0 : index
    %c17 = arith.constant 17 : index
    %5 = vector.load %arg6[%c0_8, %c0_9, %c17] : memref<1x8x290xf32, #tpu.memory_space<vmem>>, vector<1x8x256xf32>
    tpu.vector_store %arg6[%c0_8, %c0_9, %c17], %4 {strides = array<i32>} : memref<1x8x290xf32, #tpu.memory_space<vmem>>, vector<1x8x256xf32>,
    %c0_10 = arith.constant 0 : index
    %c0_11 = arith.constant 0 : index
    %c0_12 = arith.constant 0 : index
    %6 = vector.load %arg2[%c0_10, %c0_11, %c0_12] : memref<1x72x8xf32, #tpu.memory_space<vmem>>, vector<1x72x8xf32>
    %c0_13 = arith.constant 0 : index
    %c0_14 = arith.constant 0 : index
    %7 = vector.load %arg4[%c0_13, %c0_14] : memref<2x256xf32, #tpu.memory_space<vmem>>, vector<2x256xf32>
    %c0_15 = arith.constant 0 : index
    %c0_16 = arith.constant 0 : index
    %c0_17 = arith.constant 0 : index
    %8 = vector.load %arg6[%c0_15, %c0_16, %c0_17] : memref<1x8x290xf32, #tpu.memory_space<vmem>>, vector<1x8x256xf32>
    %9 = vector.extract_strided_slice %7 {offsets = [0, 0], sizes = [1, 256], strides = [1, 1]} : vector<2x256xf32> to vector<1x256xf32>
    %10 = vector.shape_cast %9 : vector<1x256xf32> to vector<1x1x256xf32>
    %11 = vector.broadcast %10 : vector<1x1x256xf32> to vector<1x8x256xf32>
    %12 = arith.mulf %8, %11 : vector<1x8x256xf32>
    %13 = vector.extract_strided_slice %6 {offsets = [0, 0, 0], sizes = [1, 8, 8], strides = [1, 1, 1]} : vector<1x72x8xf32> to vector<1x8x8xf32>
    "tpu.trace_start"() <{level = 10 : i32, message = "bok,bkn->bon"}> : () -> ()
    %cst_18 = arith.constant dense<0.000000e+00> : vector<1x8x256xf32>
    %14 = tpu.matmul %13, %12, %cst_18 {dimension_numbers = #tpu.dot_dimension_numbers<[2], [1], [1], [2], [0, 0, 0, 1, 1, 2], [0], [0]>} : vector<1x8x8xf32>, vector<1x8x256xf32>, vector<1x8x256xf32> -> vector<1x8x256xf32>
    "tpu.trace_stop"() : () -> ()
    %c0_19 = arith.constant 0 : index
    %c0_20 = arith.constant 0 : index
    %c1 = arith.constant 1 : index
    %15 = vector.load %arg6[%c0_19, %c0_20, %c1] : memref<1x8x290xf32, #tpu.memory_space<vmem>>, vector<1x8x256xf32>
    %16 = vector.extract_strided_slice %6 {offsets = [0, 8, 0], sizes = [1, 8, 8], strides = [1, 1, 1]} : vector<1x72x8xf32> to vector<1x8x8xf32>
    "tpu.trace_start"() <{level = 10 : i32, message = "bok,bkn->bon"}> : () -> ()
    %cst_21 = arith.constant dense<0.000000e+00> : vector<1x8x256xf32>
    %17 = tpu.matmul %16, %15, %cst_21 {dimension_numbers = #tpu.dot_dimension_numbers<[2], [1], [1], [2], [0, 0, 0, 1, 1, 2], [0], [0]>} : vector<1x8x8xf32>, vector<1x8x256xf32>, vector<1x8x256xf32> -> vector<1x8x256xf32>
    "tpu.trace_stop"() : () -> ()
    %18 = arith.addf %14, %17 : vector<1x8x256xf32>
    %c0_22 = arith.constant 0 : index
    %c0_23 = arith.constant 0 : index
    %c2 = arith.constant 2 : index
    %19 = vector.load %arg6[%c0_22, %c0_23, %c2] : memref<1x8x290xf32, #tpu.memory_space<vmem>>, vector<1x8x256xf32>
    %20 = vector.extract_strided_slice %7 {offsets = [1, 0], sizes = [1, 256], strides = [1, 1]} : vector<2x256xf32> to vector<1x256xf32>
    %21 = vector.shape_cast %20 : vector<1x256xf32> to vector<1x1x256xf32>
    %22 = vector.broadcast %21 : vector<1x1x256xf32> to vector<1x8x256xf32>
    %23 = arith.mulf %19, %22 : vector<1x8x256xf32>
    %24 = vector.extract_strided_slice %6 {offsets = [0, 16, 0], sizes = [1, 8, 8], strides = [1, 1, 1]} : vector<1x72x8xf32> to vector<1x8x8xf32>
    "tpu.trace_start"() <{level = 10 : i32, message = "bok,bkn->bon"}> : () -> ()
    %cst_24 = arith.constant dense<0.000000e+00> : vector<1x8x256xf32>
    %25 = tpu.matmul %24, %23, %cst_24 {dimension_numbers = #tpu.dot_dimension_numbers<[2], [1], [1], [2], [0, 0, 0, 1, 1, 2], [0], [0]>} : vector<1x8x8xf32>, vector<1x8x256xf32>, vector<1x8x256xf32> -> vector<1x8x256xf32>
    "tpu.trace_stop"() : () -> ()
    %26 = arith.addf %18, %25 : vector<1x8x256xf32>
    %c0_25 = arith.constant 0 : index
    %c0_26 = arith.constant 0 : index
    %c16 = arith.constant 16 : index
    %27 = vector.load %arg6[%c0_25, %c0_26, %c16] : memref<1x8x290xf32, #tpu.memory_space<vmem>>, vector<1x8x256xf32>
    %28 = vector.extract_strided_slice %7 {offsets = [0, 0], sizes = [1, 256], strides = [1, 1]} : vector<2x256xf32> to vector<1x256xf32>
    %29 = vector.shape_cast %28 : vector<1x256xf32> to vector<1x1x256xf32>
    %30 = vector.broadcast %29 : vector<1x1x256xf32> to vector<1x8x256xf32>
    %31 = arith.mulf %27, %30 : vector<1x8x256xf32>
    %32 = vector.extract_strided_slice %6 {offsets = [0, 24, 0], sizes = [1, 8, 8], strides = [1, 1, 1]} : vector<1x72x8xf32> to vector<1x8x8xf32>
    "tpu.trace_start"() <{level = 10 : i32, message = "bok,bkn->bon"}> : () -> ()
    %cst_27 = arith.constant dense<0.000000e+00> : vector<1x8x256xf32>
    %33 = tpu.matmul %32, %31, %cst_27 {dimension_numbers = #tpu.dot_dimension_numbers<[2], [1], [1], [2], [0, 0, 0, 1, 1, 2], [0], [0]>} : vector<1x8x8xf32>, vector<1x8x256xf32>, vector<1x8x256xf32> -> vector<1x8x256xf32>
    "tpu.trace_stop"() : () -> ()
    %34 = arith.addf %26, %33 : vector<1x8x256xf32>
    %c0_28 = arith.constant 0 : index
    %c0_29 = arith.constant 0 : index
    %c17_30 = arith.constant 17 : index
    %35 = vector.load %arg6[%c0_28, %c0_29, %c17_30] : memref<1x8x290xf32, #tpu.memory_space<vmem>>, vector<1x8x256xf32>
    %36 = vector.extract_strided_slice %6 {offsets = [0, 32, 0], sizes = [1, 8, 8], strides = [1, 1, 1]} : vector<1x72x8xf32> to vector<1x8x8xf32>
    "tpu.trace_start"() <{level = 10 : i32, message = "bok,bkn->bon"}> : () -> ()
    %cst_31 = arith.constant dense<0.000000e+00> : vector<1x8x256xf32>
    %37 = tpu.matmul %36, %35, %cst_31 {dimension_numbers = #tpu.dot_dimension_numbers<[2], [1], [1], [2], [0, 0, 0, 1, 1, 2], [0], [0]>} : vector<1x8x8xf32>, vector<1x8x256xf32>, vector<1x8x256xf32> -> vector<1x8x256xf32>
    "tpu.trace_stop"() : () -> ()
    %38 = arith.addf %34, %37 : vector<1x8x256xf32>
    %c0_32 = arith.constant 0 : index
    %c0_33 = arith.constant 0 : index
    %c18 = arith.constant 18 : index
    %39 = vector.load %arg6[%c0_32, %c0_33, %c18] : memref<1x8x290xf32, #tpu.memory_space<vmem>>, vector<1x8x256xf32>
    %40 = vector.extract_strided_slice %7 {offsets = [1, 0], sizes = [1, 256], strides = [1, 1]} : vector<2x256xf32> to vector<1x256xf32>
    %41 = vector.shape_cast %40 : vector<1x256xf32> to vector<1x1x256xf32>
    %42 = vector.broadcast %41 : vector<1x1x256xf32> to vector<1x8x256xf32>
    %43 = arith.mulf %39, %42 : vector<1x8x256xf32>
    %44 = vector.extract_strided_slice %6 {offsets = [0, 40, 0], sizes = [1, 8, 8], strides = [1, 1, 1]} : vector<1x72x8xf32> to vector<1x8x8xf32>
    "tpu.trace_start"() <{level = 10 : i32, message = "bok,bkn->bon"}> : () -> ()
    %cst_34 = arith.constant dense<0.000000e+00> : vector<1x8x256xf32>
    %45 = tpu.matmul %44, %43, %cst_34 {dimension_numbers = #tpu.dot_dimension_numbers<[2], [1], [1], [2], [0, 0, 0, 1, 1, 2], [0], [0]>} : vector<1x8x8xf32>, vector<1x8x256xf32>, vector<1x8x256xf32> -> vector<1x8x256xf32>
    "tpu.trace_stop"() : () -> ()
    %46 = arith.addf %38, %45 : vector<1x8x256xf32>
    %c0_35 = arith.constant 0 : index
    %c0_36 = arith.constant 0 : index
    %c32 = arith.constant 32 : index
    %47 = vector.load %arg6[%c0_35, %c0_36, %c32] : memref<1x8x290xf32, #tpu.memory_space<vmem>>, vector<1x8x256xf32>
    %48 = vector.extract_strided_slice %7 {offsets = [0, 0], sizes = [1, 256], strides = [1, 1]} : vector<2x256xf32> to vector<1x256xf32>
    %49 = vector.shape_cast %48 : vector<1x256xf32> to vector<1x1x256xf32>
    %50 = vector.broadcast %49 : vector<1x1x256xf32> to vector<1x8x256xf32>
    %51 = arith.mulf %47, %50 : vector<1x8x256xf32>
    %52 = vector.extract_strided_slice %6 {offsets = [0, 48, 0], sizes = [1, 8, 8], strides = [1, 1, 1]} : vector<1x72x8xf32> to vector<1x8x8xf32>
    "tpu.trace_start"() <{level = 10 : i32, message = "bok,bkn->bon"}> : () -> ()
    %cst_37 = arith.constant dense<0.000000e+00> : vector<1x8x256xf32>
    %53 = tpu.matmul %52, %51, %cst_37 {dimension_numbers = #tpu.dot_dimension_numbers<[2], [1], [1], [2], [0, 0, 0, 1, 1, 2], [0], [0]>} : vector<1x8x8xf32>, vector<1x8x256xf32>, vector<1x8x256xf32> -> vector<1x8x256xf32>
    "tpu.trace_stop"() : () -> ()
    %54 = arith.addf %46, %53 : vector<1x8x256xf32>
    %c0_38 = arith.constant 0 : index
    %c0_39 = arith.constant 0 : index
    %c33 = arith.constant 33 : index
    %55 = vector.load %arg6[%c0_38, %c0_39, %c33] : memref<1x8x290xf32, #tpu.memory_space<vmem>>, vector<1x8x256xf32>
    %56 = vector.extract_strided_slice %6 {offsets = [0, 56, 0], sizes = [1, 8, 8], strides = [1, 1, 1]} : vector<1x72x8xf32> to vector<1x8x8xf32>
    "tpu.trace_start"() <{level = 10 : i32, message = "bok,bkn->bon"}> : () -> ()
    %cst_40 = arith.constant dense<0.000000e+00> : vector<1x8x256xf32>
    %57 = tpu.matmul %56, %55, %cst_40 {dimension_numbers = #tpu.dot_dimension_numbers<[2], [1], [1], [2], [0, 0, 0, 1, 1, 2], [0], [0]>} : vector<1x8x8xf32>, vector<1x8x256xf32>, vector<1x8x256xf32> -> vector<1x8x256xf32>
    "tpu.trace_stop"() : () -> ()
    %58 = arith.addf %54, %57 : vector<1x8x256xf32>
    %c0_41 = arith.constant 0 : index
    %c0_42 = arith.constant 0 : index
    %c34 = arith.constant 34 : index
    %59 = vector.load %arg6[%c0_41, %c0_42, %c34] : memref<1x8x290xf32, #tpu.memory_space<vmem>>, vector<1x8x256xf32>
    %60 = vector.extract_strided_slice %7 {offsets = [1, 0], sizes = [1, 256], strides = [1, 1]} : vector<2x256xf32> to vector<1x256xf32>
    %61 = vector.shape_cast %60 : vector<1x256xf32> to vector<1x1x256xf32>
    %62 = vector.broadcast %61 : vector<1x1x256xf32> to vector<1x8x256xf32>
    %63 = arith.mulf %59, %62 : vector<1x8x256xf32>
    %64 = vector.extract_strided_slice %6 {offsets = [0, 64, 0], sizes = [1, 8, 8], strides = [1, 1, 1]} : vector<1x72x8xf32> to vector<1x8x8xf32>
    "tpu.trace_start"() <{level = 10 : i32, message = "bok,bkn->bon"}> : () -> ()
    %cst_43 = arith.constant dense<0.000000e+00> : vector<1x8x256xf32>
    %65 = tpu.matmul %64, %63, %cst_43 {dimension_numbers = #tpu.dot_dimension_numbers<[2], [1], [1], [2], [0, 0, 0, 1, 1, 2], [0], [0]>} : vector<1x8x8xf32>, vector<1x8x256xf32>, vector<1x8x256xf32> -> vector<1x8x256xf32>
    "tpu.trace_stop"() : () -> ()
    %66 = arith.addf %58, %65 : vector<1x8x256xf32>
    %c0_44 = arith.constant 0 : index
    %c0_45 = arith.constant 0 : index
    %c0_46 = arith.constant 0 : index
    %67 = vector.load %arg3[%c0_44, %c0_45, %c0_46] : memref<1x8x1xf32, #tpu.memory_space<vmem>>, vector<1x8x1xf32>
    %68 = vector.broadcast %67 : vector<1x8x1xf32> to vector<1x8x256xf32>
    %69 = arith.addf %66, %68 : vector<1x8x256xf32>
    %c0_47 = arith.constant 0 : index
    %c0_48 = arith.constant 0 : index
    %c0_49 = arith.constant 0 : index
    %70 = vector.load %arg5[%c0_47, %c0_48, %c0_49] : memref<1x8x256xf32, #tpu.memory_space<vmem>>, vector<1x8x256xf32>
    tpu.vector_store %arg5[%c0_47, %c0_48, %c0_49], %69 {strides = array<i32>} : memref<1x8x256xf32, #tpu.memory_space<vmem>>, vector<1x8x256xf32>,
    return
  }
  func.func @transform_0(%arg0: i32) -> (i32, i32, i32) {
    %c0_i32 = arith.constant 0 : i32
    %c0_i32_0 = arith.constant 0 : i32
    %c0_i32_1 = arith.constant 0 : i32
    return %arg0, %c0_i32, %c0_i32_0 : i32, i32, i32
  }
  func.func @transform_1(%arg0: i32) -> (i32, i32, i32) {
    %c0_i32 = arith.constant 0 : i32
    %c0_i32_0 = arith.constant 0 : i32
    %c0_i32_1 = arith.constant 0 : i32
    return %arg0, %c0_i32, %c0_i32_0 : i32, i32, i32
  }
  func.func @transform_2(%arg0: i32) -> (i32, i32, i32) {
    %c0_i32 = arith.constant 0 : i32
    %c0_i32_0 = arith.constant 0 : i32
    %c0_i32_1 = arith.constant 0 : i32
    return %arg0, %c0_i32, %c0_i32_0 : i32, i32, i32
  }
  func.func @transform_3(%arg0: i32) -> (i32, i32) {
    %c0_i32 = arith.constant 0 : i32
    %c0_i32_0 = arith.constant 0 : i32
    %c0_i32_1 = arith.constant 0 : i32
    return %c0_i32, %c0_i32_0 : i32, i32
  }
  func.func @transform_4(%arg0: i32) -> (i32, i32, i32) {
    %c0_i32 = arith.constant 0 : i32
    %c0_i32_0 = arith.constant 0 : i32
    %c0_i32_1 = arith.constant 0 : i32
    return %arg0, %c0_i32, %c0_i32_0 : i32, i32, i32
  }
}

</mosaic_0001>

<llo_original>
// kernel: tpu_custom_call.1
$region0: #{tpu_custom_call.1}
  #allocation0 [shape = 'u32[]', space=smem, size = 0x4, offset = 0x4, fixed_abs, tag = 'smem constant byte address 0x4 - core index']
  #allocation1 [shape = 'u32[72,128]{1,0:T(1,128)}', space=vmem, size = 0x9000, scoped, tag = 'internal scratch']
  #allocation2 [shape = 'f32[1,8,290]{2,1,0:T(8,128)}', space=vmem, size = 0x3000, scoped, tag = 'scratch operand']
  %s0 = inlined_call_operand.vmem [shape: f32[2,8,256], index: 0, kind: input, shape index: {}]
  %s1 = inlined_call_operand.vmem [shape: f32[2,72,8], index: 1, kind: input, shape index: {}]
  %s2 = inlined_call_operand.vmem [shape: f32[2,8,1], index: 2, kind: input, shape index: {}]
  %s3 = inlined_call_operand.vmem [shape: f32[2,256], index: 3, kind: input, shape index: {}]
  %s4 = inlined_call_operand.hbm [shape: f32[2,8,256], index: 4, kind: output, shape index: {}]
  %s5 = sld [smem:[#allocation0]]
  $region49: #{tpu_custom_call.1} parent=0
    _
  %s7 = ssub.s32 1, %s5
  %s8 = scalar_select 0, %s7, %s5
  $region1: #{tpu_custom_call.1} parent=0
    #allocation3 [shape = 'u8[16384]{0}', space=vmem, size = 0x4000, scoped, tag = 'output window, operand 0']
    #allocation4 [shape = 's32[2]{0}', space=sflag, size = 0x8, scoped, tag = 'scoped memory for tpu_custom_call.1']
    %9 = vsyncpa [#allocation4], 0
    %s10 = scalar_lea.sflag [#allocation4], 1
    %11 = vsyncpa %s10, 0
    loop: start=0, step=1, limit=4
    $region2: #{tpu_custom_call.1} parent=1 // loop_pre_header
      _
    $region3: #{tpu_custom_call.1} parent=1 // loop_header
      %s13 = sphi 0, %s17
      %p14 = scmp.ge.s32.totalorder %s13, 4
      %s23 = sphi 0, %s25
      %s26 = sphi 0, %s23
      %s27 = sphi 0, %s26
      %s43 = sphi 0, %s27
      %s49 = sphi 0, %s51
      %s52 = sphi 0, %s49
      %s53 = sphi 0, %s52
      %s69 = sphi 0, %s53
      %s75 = sphi 0, %s77
      %s78 = sphi 0, %s75
      %s79 = sphi 0, %s78
      %s95 = sphi 0, %s79
      %s99 = sphi 0, %s99
      %s101 = sphi 0, %s99
      %s102 = sphi 0, %s101
      %s116 = sphi 0, %s102
      %s122 = sphi 0, %s124
      %s125 = sphi 0, %s122
      %s126 = sphi 0, %s125
      %s142 = sphi 0, %s126
    $region4: #{tpu_custom_call.1} parent=1 // loop_header_branch
      %16 = sbr.rel (%p14) target = $region8
    $region5: #{tpu_custom_call.1} parent=1 // loop_body
      %s18 = ssub.s32 %s13, 1
      %s19 = ssub.s32 %s13, 2
      %s20 = sadd.s32 %s13, 1
      %s21 = ssub.s32 %s13, %s20
      %p22 = scmp.eq.s32.totalorder %s21, 0
      %s24 = sadd.s32 %s23, 1
      %s25 = scalar_select %p22, %s23, %s24
      %p28 = pneg %p22
      %p29 = scmp.eq.s32.totalorder %s13, 1
      %p30 = por %p28, %p29
      %p31 = scmp.ne.s32.totalorder %s23, %s26
      %p32 = scmp.eq.s32.totalorder %s13, 0
      %p33 = por %p31, %p32
      %p34 = scmp.ne.s32.totalorder %s23, %s26
      %p35 = scmp.eq.s32.totalorder %s18, 1
      %p36 = por %p34, %p35
      %p37 = scmp.ne.s32.totalorder %s26, %s27
      %p38 = scmp.eq.s32.totalorder %s18, 0
      %p39 = por %p37, %p38
      %p40 = scmp.ne.s32.totalorder %s26, %s27
      %p41 = scmp.eq.s32.totalorder %s19, 1
      %p42 = por %p40, %p41
      %p44 = scmp.ne.s32.totalorder %s27, %s43
      %p45 = scmp.eq.s32.totalorder %s19, 0
      %p46 = por %p44, %p45
      %s47 = ssub.s32 %s13, %s20
      %p48 = scmp.eq.s32.totalorder %s47, 0
      %s50 = sadd.s32 %s49, 1
      %s51 = scalar_select %p48, %s49, %s50
      %p54 = pneg %p48
      %p55 = scmp.eq.s32.totalorder %s13, 1
      %p56 = por %p54, %p55
      %p57 = scmp.ne.s32.totalorder %s49, %s52
      %p58 = scmp.eq.s32.totalorder %s13, 0
      %p59 = por %p57, %p58
      %p60 = scmp.ne.s32.totalorder %s49, %s52
      %p61 = scmp.eq.s32.totalorder %s18, 1
      %p62 = por %p60, %p61
      %p63 = scmp.ne.s32.totalorder %s52, %s53
      %p64 = scmp.eq.s32.totalorder %s18, 0
      %p65 = por %p63, %p64
      %p66 = scmp.ne.s32.totalorder %s52, %s53
      %p67 = scmp.eq.s32.totalorder %s19, 1
      %p68 = por %p66, %p67
      %p70 = scmp.ne.s32.totalorder %s53, %s69
      %p71 = scmp.eq.s32.totalorder %s19, 0
      %p72 = por %p70, %p71
      %s73 = ssub.s32 %s13, %s20
      %p74 = scmp.eq.s32.totalorder %s73, 0
      %s76 = sadd.s32 %s75, 1
      %s77 = scalar_select %p74, %s75, %s76
      %p80 = pneg %p74
      %p81 = scmp.eq.s32.totalorder %s13, 1
      %p82 = por %p80, %p81
      %p83 = scmp.ne.s32.totalorder %s75, %s78
      %p84 = scmp.eq.s32.totalorder %s13, 0
      %p85 = por %p83, %p84
      %p86 = scmp.ne.s32.totalorder %s75, %s78
      %p87 = scmp.eq.s32.totalorder %s18, 1
      %p88 = por %p86, %p87
      %p89 = scmp.ne.s32.totalorder %s78, %s79
      %p90 = scmp.eq.s32.totalorder %s18, 0
      %p91 = por %p89, %p90
      %p92 = scmp.ne.s32.totalorder %s78, %s79
      %p93 = scmp.eq.s32.totalorder %s19, 1
      %p94 = por %p92, %p93
      %p96 = scmp.ne.s32.totalorder %s79, %s95
      %p97 = scmp.eq.s32.totalorder %s19, 0
      %p98 = por %p96, %p97
      %s100 = sadd.s32 %s99, 1
      %p103 = scmp.eq.s32.totalorder %s13, 1
      %p104 = scmp.ne.s32.totalorder %s99, %s101
      %p105 = scmp.eq.s32.totalorder %s13, 0
      %p106 = por %p104, %p105
      %p107 = scmp.ne.s32.totalorder %s99, %s101
      %p108 = scmp.eq.s32.totalorder %s18, 1
      %p109 = por %p107, %p108
      %p110 = scmp.ne.s32.totalorder %s101, %s102
      %p111 = scmp.eq.s32.totalorder %s18, 0
      %p112 = por %p110, %p111
      %p113 = scmp.ne.s32.totalorder %s101, %s102
      %p114 = scmp.eq.s32.totalorder %s19, 1
      %p115 = por %p113, %p114
      %p117 = scmp.ne.s32.totalorder %s102, %s116
      %p118 = scmp.eq.s32.totalorder %s19, 0
      %p119 = por %p117, %p118
      %s120 = ssub.s32 %s13, %s20
      %p121 = scmp.eq.s32.totalorder %s120, 0
      %s123 = sadd.s32 %s122, 1
      %s124 = scalar_select %p121, %s122, %s123
      %p127 = pneg %p121
      %p128 = scmp.eq.s32.totalorder %s13, 1
      %p129 = por %p127, %p128
      %p130 = scmp.ne.s32.totalorder %s122, %s125
      %p131 = scmp.eq.s32.totalorder %s13, 0
      %p132 = por %p130, %p131
      %p133 = scmp.ne.s32.totalorder %s122, %s125
      %p134 = scmp.eq.s32.totalorder %s18, 1
      %p135 = por %p133, %p134
      %p136 = scmp.ne.s32.totalorder %s125, %s126
      %p137 = scmp.eq.s32.totalorder %s18, 0
      %p138 = por %p136, %p137
      %p139 = scmp.ne.s32.totalorder %s125, %s126
      %p140 = scmp.eq.s32.totalorder %s19, 1
      %p141 = por %p139, %p140
      %p143 = scmp.ne.s32.totalorder %s126, %s142
      %p144 = scmp.eq.s32.totalorder %s19, 0
      %p145 = por %p143, %p144
      %p146 = scmp.le.s32.totalorder 1, %s13
      %p147 = scmp.lt.s32.totalorder %s13, 3
      %p148 = pnand %p146, %p147
      %p149 = pneg %p148
      // Predicated region
      $region9: #{tpu_custom_call.1} parent=5 // pred_check
        _
      $region10: #{tpu_custom_call.1} parent=5 // pred_check_branch
        %151 = sbr.rel (%p148) target = $region12
      $region11: #{tpu_custom_call.1} parent=5 // pred_region
        %s152 = ssub.s32 %s13, 1
        // Predicated region
        $region13: #{tpu_custom_call.1} parent=11 // pred_check
          %p153 = pneg %p112
        $region14: #{tpu_custom_call.1} parent=11 // pred_check_branch
          %155 = sbr.rel (%p153) target = $region16
        $region15: #{tpu_custom_call.1} parent=11 // pred_region
          _
        $region16: #{tpu_custom_call.1} parent=11 // pred_fallthru
          _
      $region12: #{tpu_custom_call.1} parent=5 // pred_fallthru
        _
      %p156 = scmp.lt.s32.totalorder %s13, 2
      // Predicated region
      $region17: #{tpu_custom_call.1} parent=5 // pred_check
        %p157 = pneg %p156
      $region18: #{tpu_custom_call.1} parent=5 // pred_check_branch
        %159 = sbr.rel (%p157) target = $region20
      $region19: #{tpu_custom_call.1} parent=5 // pred_region
        // Predicated region
        $region21: #{tpu_custom_call.1} parent=19 // pred_check
          %p160 = pneg %p33
        $region22: #{tpu_custom_call.1} parent=19 // pred_check_branch
          %162 = sbr.rel (%p160) target = $region24
        $region23: #{tpu_custom_call.1} parent=19 // pred_region
          %p163 = scmp.lt.s32.totalorder %s13, 1
          %s164 = scalar_select %p163, %s13, 1
          %s165 = smul.addr %s164, 2
          %s166 = smul.addr %s165, 8
          %s167 = scalar_lea.vmem %s0, %s166
        $region24: #{tpu_custom_call.1} parent=19 // pred_fallthru
          _
        // Predicated region
        $region25: #{tpu_custom_call.1} parent=19 // pred_check
          %p168 = pneg %p59
        $region26: #{tpu_custom_call.1} parent=19 // pred_check_branch
          %170 = sbr.rel (%p168) target = $region28
        $region27: #{tpu_custom_call.1} parent=19 // pred_region
          %p171 = scmp.lt.s32.totalorder %s13, 1
          %s172 = scalar_select %p171, %s13, 1
          %s173 = smul.addr %s172, 9
          %s174 = smul.addr %s173, 8
          %s175 = scalar_lea.vmem %s1, %s174
        $region28: #{tpu_custom_call.1} parent=19 // pred_fallthru
          _
        // Predicated region
        $region29: #{tpu_custom_call.1} parent=19 // pred_check
          %p176 = pneg %p85
        $region30: #{tpu_custom_call.1} parent=19 // pred_check_branch
          %178 = sbr.rel (%p176) target = $region32
        $region31: #{tpu_custom_call.1} parent=19 // pred_region
          %p179 = scmp.lt.s32.totalorder %s13, 1
          %s180 = scalar_select %p179, %s13, 1
          %s181 = smul.addr %s180, 8
          %s182 = scalar_lea.vmem %s2, %s181
        $region32: #{tpu_custom_call.1} parent=19 // pred_fallthru
          _
      $region20: #{tpu_custom_call.1} parent=5 // pred_fallthru
        _
      %p183 = scmp.le.s32.totalorder 1, %s13
      %p184 = scmp.lt.s32.totalorder %s13, 3
      %p185 = pnand %p183, %p184
      %p186 = pneg %p185
      // Predicated region
      $region33: #{tpu_custom_call.1} parent=5 // pred_check
        _
      $region34: #{tpu_custom_call.1} parent=5 // pred_check_branch
        %188 = sbr.rel (%p185) target = $region36
      $region35: #{tpu_custom_call.1} parent=5 // pred_region
        %s189 = ssub.s32 %s13, 1
        %p190 = scmp.lt.s32.totalorder %s18, 1
        %s191 = scalar_select %p190, %s18, 1
        %s192 = smul.addr %s191, 2
        %s193 = smul.addr %s192, 8
        %s194 = scalar_lea.vmem %s0, %s193
        %p195 = pneg %p39
        %p196 = pneg %p36
        %p197 = scmp.lt.s32.totalorder %s18, 1
        %s198 = scalar_select %p197, %s18, 1
        %s199 = smul.addr %s198, 9
        %s200 = smul.addr %s199, 8
        %s201 = scalar_lea.vmem %s1, %s200
        %p202 = pneg %p65
        %p203 = pneg %p62
        %p204 = scmp.lt.s32.totalorder %s18, 1
        %s205 = scalar_select %p204, %s18, 1
        %s206 = smul.addr %s205, 8
        %s207 = scalar_lea.vmem %s2, %s206
        %p208 = pneg %p91
        %p209 = pneg %p88
        %p210 = pneg %p112
        %p211 = pneg %p109
        %p212 = pneg %p138
        %p213 = pneg %p135
        %s214 = sand.u32 %s125, 1
        %s215 = scalar_lea.sflag [#allocation4], %s214
        %s216 = sand.u32 %s125, 1
        %s217 = smul.addr %s216, 16
        %s218 = scalar_lea.vmem [#allocation3], %s217
        %p219 = scmp.lt.s32.totalorder %s18, 1
        %s220 = scalar_select %p219, %s18, 1
        %s221 = smul.addr %s220, 2
        %s222 = smul.addr %s221, 8
        %s223 = scalar_lea.vmem %s0, %s222
        %p224 = scmp.lt.s32.totalorder %s18, 1
        %s225 = scalar_select %p224, %s18, 1
        %s226 = smul.addr %s225, 9
        %s227 = smul.addr %s226, 8
        %s228 = scalar_lea.vmem %s1, %s227
        %p229 = scmp.lt.s32.totalorder %s18, 1
        %s230 = scalar_select %p229, %s18, 1
        %s231 = smul.addr %s230, 8
        %s232 = scalar_lea.vmem %s2, %s231
        %vm233 = vcmask 138240
        %234 = vst.msk [vmem:[#allocation2] sm:$0xff] %vm233, 0.0
        %vm235 = vcmask 277640
        %236 = vst.msk [vmem:[#allocation2 + $0x10] sm:$0xff] %vm235, 0.0
        %v237 = vld [vmem:[%s223] sm:$0xff]
        %v238 = vld [vmem:[%s223 + $0x8] sm:$0xff]
        %241 = vrot.lane.b32.xlu0 %v237, 17
        %v242 = vpop.permute.xlu0 %241
        %243 = vrot.lane.b32.xlu0 %v238, 17
        %v244 = vpop.permute.xlu0 %243
        %v245 = vsel %vm233, %v242, %v244
        %vm249 = vcmask 1047688
        %250 = vst.msk [vmem:[#allocation2] sm:$0xff] %vm249, %v242
        %251 = vst [vmem:[#allocation2 + $0x8] sm:$0xff] %v245
        %252 = vst.msk [vmem:[#allocation2 + $0x10] sm:$0xff] %vm233, %v244
        %v253 = vld [vmem:[%s228] sm:$0xff]
        %v254 = vld [vmem:[%s228 + $0x8] sm:$0xff]
        %v255 = vld [vmem:[%s228 + $0x10] sm:$0xff]
        %v256 = vld [vmem:[%s228 + $0x18] sm:$0xff]
        %v257 = vld [vmem:[%s228 + $0x20] sm:$0xff]
        %v258 = vld [vmem:[%s228 + $0x28] sm:$0xff]
        %v259 = vld [vmem:[%s228 + $0x30] sm:$0xff]
        %v260 = vld [vmem:[%s228 + $0x38] sm:$0xff]
        %v261 = vld [vmem:[%s228 + $0x40] sm:$0xff]
        %v262 = vld [vmem:[%s3] sm:$0xf]
        %v263 = vld [vmem:[#allocation2] sm:$0xff]
        %v264 = vld [vmem:[#allocation2 + $0x8] sm:$0xff]
        %v266 = vperm.slane %v262, 0
        %v267 = vperm.slane %v262, 2
        %v270 = vperm.slane %v266, 0
        %v271 = vperm.slane %v267, 0
        %v272 = vmul.f32 %v263, %v270
        %v273 = vmul.f32 %v264, %v271
        %v274 = vld [vmem:[#allocation2] sm:$0xff]
        %v275 = vld [vmem:[#allocation2 + $0x8] sm:$0xff]
        %v276 = vld [vmem:[#allocation2 + $0x10] sm:$0xff]
        %280 = vrot.lane.b32.xlu0 %v274, 127
        %v281 = vpop.permute.xlu0 %280
        %282 = vrot.lane.b32.xlu0 %v275, 127
        %v283 = vpop.permute.xlu0 %282
        %284 = vrot.lane.b32.xlu0 %v276, 127
        %v285 = vpop.permute.xlu0 %284
        %vm286 = vcmask 1039360
        %v287 = vsel %vm286, %v281, %v283
        %v288 = vsel %vm286, %v283, %v285
        %vm291 = vcmask 64512
        %v293 = vsel %vm291, %v254, 0
        %295 = vmatpush.msra.mxu0 0.0
        %296 = vmatpush.msra.mxu0 0.0
        %297 = vmatpush.msra.mxu0 0.0
        %298 = vmatpush.msra.mxu0 0.0
        %299 = vmatpush.msra.mxu0 0.0
        %300 = vmatpush.msra.mxu0 0.0
        %301 = vmatpush.msra.mxu0 0.0
        %302 = vmatpush.msra.mxu0 0.0
        %303 = vmatpush.msra.mxu0 0.0
        %304 = vmatpush.msra.mxu0 0.0
        %305 = vmatpush.msra.mxu0 0.0
        %306 = vmatpush.msra.mxu0 0.0
        %307 = vmatpush.msra.mxu0 0.0
        %308 = vmatpush.msra.mxu0 0.0
        %309 = vmatpush.msra.mxu0 0.0
        %310 = vmatpush.msra.mxu0 %v287
        %311 = vmatmul.f32.gmra.mxu0 %v293
        %v312 = vpop.f32.mrf.mxu0
        %v313 = vadd.f32 0.0, %v312
        %314 = vdwg.mxu0
        %315 = vmatpush.msra.mxu0 0.0
        %316 = vmatpush.msra.mxu0 0.0
        %317 = vmatpush.msra.mxu0 0.0
        %318 = vmatpush.msra.mxu0 0.0
        %319 = vmatpush.msra.mxu0 0.0
        %320 = vmatpush.msra.mxu0 0.0
        %321 = vmatpush.msra.mxu0 0.0
        %322 = vmatpush.msra.mxu0 0.0
        %323 = vmatpush.msra.mxu0 0.0
        %324 = vmatpush.msra.mxu0 0.0
        %325 = vmatpush.msra.mxu0 0.0
        %326 = vmatpush.msra.mxu0 0.0
        %327 = vmatpush.msra.mxu0 0.0
        %328 = vmatpush.msra.mxu0 0.0
        %329 = vmatpush.msra.mxu0 0.0
        %330 = vmatpush.msra.mxu0 %v288
        %331 = vmatmul.f32.gmra.mxu0 %v293
        %v332 = vpop.f32.mrf.mxu0
        %v333 = vadd.f32 0.0, %v332
        %334 = vdwg.mxu0
        %v336 = vsel %vm291, %v253, 0
        %338 = vmatpush.msra.mxu0 0.0
        %339 = vmatpush.msra.mxu0 0.0
        %340 = vmatpush.msra.mxu0 0.0
        %341 = vmatpush.msra.mxu0 0.0
        %342 = vmatpush.msra.mxu0 0.0
        %343 = vmatpush.msra.mxu0 0.0
        %344 = vmatpush.msra.mxu0 0.0
        %345 = vmatpush.msra.mxu0 0.0
        %346 = vmatpush.msra.mxu0 0.0
        %347 = vmatpush.msra.mxu0 0.0
        %348 = vmatpush.msra.mxu0 0.0
        %349 = vmatpush.msra.mxu0 0.0
        %350 = vmatpush.msra.mxu0 0.0
        %351 = vmatpush.msra.mxu0 0.0
        %352 = vmatpush.msra.mxu0 0.0
        %353 = vmatpush.msra.mxu0 %v272
        %354 = vmatmul.f32.gmra.mxu0 %v336
        %v355 = vpop.f32.mrf.mxu0
        %v356 = vadd.f32 %v313, %v355
        %357 = vdwg.mxu0
        %358 = vmatpush.msra.mxu0 0.0
        %359 = vmatpush.msra.mxu0 0.0
        %360 = vmatpush.msra.mxu0 0.0
        %361 = vmatpush.msra.mxu0 0.0
        %362 = vmatpush.msra.mxu0 0.0
        %363 = vmatpush.msra.mxu0 0.0
        %364 = vmatpush.msra.mxu0 0.0
        %365 = vmatpush.msra.mxu0 0.0
        %366 = vmatpush.msra.mxu0 0.0
        %367 = vmatpush.msra.mxu0 0.0
        %368 = vmatpush.msra.mxu0 0.0
        %369 = vmatpush.msra.mxu0 0.0
        %370 = vmatpush.msra.mxu0 0.0
        %371 = vmatpush.msra.mxu0 0.0
        %372 = vmatpush.msra.mxu0 0.0
        %373 = vmatpush.msra.mxu0 %v273
        %374 = vmatmul.f32.gmra.mxu0 %v336
        %v375 = vpop.f32.mrf.mxu0
        %v376 = vadd.f32 %v333, %v375
        %377 = vdwg.mxu0
        %v378 = vld [vmem:[#allocation2] sm:$0xff]
        %v379 = vld [vmem:[#allocation2 + $0x8] sm:$0xff]
        %v380 = vld [vmem:[#allocation2 + $0x10] sm:$0xff]
        %v381 = vperm.slane %v262, 1
        %v382 = vperm.slane %v262, 3
        %v385 = vperm.slane %v381, 1
        %v386 = vperm.slane %v382, 1
        %389 = vrot.lane.b32.xlu0 %v385, 2
        %v390 = vpop.permute.xlu0 %389
        %391 = vrot.lane.b32.xlu0 %v386, 2
        %v392 = vpop.permute.xlu0 %391
        %vm393 = vcmask 15360
        %v394 = vsel %vm393, %v390, %v392
        %v398 = vmul.f32 %v378, %v390
        %v399 = vmul.f32 %v379, %v394
        %v400 = vmul.f32 %v380, %v392
        %404 = vrot.lane.b32.xlu0 %v398, 126
        %v405 = vpop.permute.xlu0 %404
        %406 = vrot.lane.b32.xlu0 %v399, 126
        %v407 = vpop.permute.xlu0 %406
        %408 = vrot.lane.b32.xlu0 %v400, 126
        %v409 = vpop.permute.xlu0 %408
        %vm410 = vcmask 1031168
        %v411 = vsel %vm410, %v405, %v407
        %v412 = vsel %vm410, %v407, %v409
        %v416 = vsel %vm291, %v255, 0
        %418 = vmatpush.msra.mxu0 0.0
        %419 = vmatpush.msra.mxu0 0.0
        %420 = vmatpush.msra.mxu0 0.0
        %421 = vmatpush.msra.mxu0 0.0
        %422 = vmatpush.msra.mxu0 0.0
        %423 = vmatpush.msra.mxu0 0.0
        %424 = vmatpush.msra.mxu0 0.0
        %425 = vmatpush.msra.mxu0 0.0
        %426 = vmatpush.msra.mxu0 0.0
        %427 = vmatpush.msra.mxu0 0.0
        %428 = vmatpush.msra.mxu0 0.0
        %429 = vmatpush.msra.mxu0 0.0
        %430 = vmatpush.msra.mxu0 0.0
        %431 = vmatpush.msra.mxu0 0.0
        %432 = vmatpush.msra.mxu0 0.0
        %433 = vmatpush.msra.mxu0 %v411
        %434 = vmatmul.f32.gmra.mxu0 %v416
        %v435 = vpop.f32.mrf.mxu0
        %v436 = vadd.f32 0.0, %v435
        %437 = vdwg.mxu0
        %438 = vmatpush.msra.mxu0 0.0
        %439 = vmatpush.msra.mxu0 0.0
        %440 = vmatpush.msra.mxu0 0.0
        %441 = vmatpush.msra.mxu0 0.0
        %442 = vmatpush.msra.mxu0 0.0
        %443 = vmatpush.msra.mxu0 0.0
        %444 = vmatpush.msra.mxu0 0.0
        %445 = vmatpush.msra.mxu0 0.0
        %446 = vmatpush.msra.mxu0 0.0
        %447 = vmatpush.msra.mxu0 0.0
        %448 = vmatpush.msra.mxu0 0.0
        %449 = vmatpush.msra.mxu0 0.0
        %450 = vmatpush.msra.mxu0 0.0
        %451 = vmatpush.msra.mxu0 0.0
        %452 = vmatpush.msra.mxu0 0.0
        %453 = vmatpush.msra.mxu0 %v412
        %454 = vmatmul.f32.gmra.mxu0 %v416
        %v455 = vpop.f32.mrf.mxu0
        %v456 = vadd.f32 0.0, %v455
        %457 = vdwg.mxu0
        %v458 = vadd.f32 %v356, %v436
        %v459 = vadd.f32 %v376, %v456
        %v460 = vld [vmem:[#allocation2] sm:$0xff]
        %v461 = vld [vmem:[#allocation2 + $0x8] sm:$0xff]
        %v462 = vld [vmem:[#allocation2 + $0x10] sm:$0xff]
        %465 = vrot.lane.b32.xlu0 %v270, 16
        %v466 = vpop.permute.xlu0 %465
        %467 = vrot.lane.b32.xlu0 %v271, 16
        %v468 = vpop.permute.xlu0 %467
        %vm469 = vcmask 130048
        %v470 = vsel %vm469, %v466, %v468
        %v474 = vmul.f32 %v460, %v466
        %v475 = vmul.f32 %v461, %v470
        %v476 = vmul.f32 %v462, %v468
        %480 = vrot.lane.b32.xlu0 %v474, 112
        %v481 = vpop.permute.xlu0 %480
        %482 = vrot.lane.b32.xlu0 %v475, 112
        %v483 = vpop.permute.xlu0 %482
        %484 = vrot.lane.b32.xlu0 %v476, 112
        %v485 = vpop.permute.xlu0 %484
        %vm486 = vcmask 916480
        %v487 = vsel %vm486, %v481, %v483
        %v488 = vsel %vm486, %v483, %v485
        %v492 = vsel %vm291, %v256, 0
        %494 = vmatpush.msra.mxu0 0.0
        %495 = vmatpush.msra.mxu0 0.0
        %496 = vmatpush.msra.mxu0 0.0
        %497 = vmatpush.msra.mxu0 0.0
        %498 = vmatpush.msra.mxu0 0.0
        %499 = vmatpush.msra.mxu0 0.0
        %500 = vmatpush.msra.mxu0 0.0
        %501 = vmatpush.msra.mxu0 0.0
        %502 = vmatpush.msra.mxu0 0.0
        %503 = vmatpush.msra.mxu0 0.0
        %504 = vmatpush.msra.mxu0 0.0
        %505 = vmatpush.msra.mxu0 0.0
        %506 = vmatpush.msra.mxu0 0.0
        %507 = vmatpush.msra.mxu0 0.0
        %508 = vmatpush.msra.mxu0 0.0
        %509 = vmatpush.msra.mxu0 %v487
        %510 = vmatmul.f32.gmra.mxu0 %v492
        %v511 = vpop.f32.mrf.mxu0
        %v512 = vadd.f32 0.0, %v511
        %513 = vdwg.mxu0
        %514 = vmatpush.msra.mxu0 0.0
        %515 = vmatpush.msra.mxu0 0.0
        %516 = vmatpush.msra.mxu0 0.0
        %517 = vmatpush.msra.mxu0 0.0
        %518 = vmatpush.msra.mxu0 0.0
        %519 = vmatpush.msra.mxu0 0.0
        %520 = vmatpush.msra.mxu0 0.0
        %521 = vmatpush.msra.mxu0 0.0
        %522 = vmatpush.msra.mxu0 0.0
        %523 = vmatpush.msra.mxu0 0.0
        %524 = vmatpush.msra.mxu0 0.0
        %525 = vmatpush.msra.mxu0 0.0
        %526 = vmatpush.msra.mxu0 0.0
        %527 = vmatpush.msra.mxu0 0.0
        %528 = vmatpush.msra.mxu0 0.0
        %529 = vmatpush.msra.mxu0 %v488
        %530 = vmatmul.f32.gmra.mxu0 %v492
        %v531 = vpop.f32.mrf.mxu0
        %v532 = vadd.f32 0.0, %v531
        %533 = vdwg.mxu0
        %v534 = vadd.f32 %v458, %v512
        %v535 = vadd.f32 %v459, %v532
        %v536 = vld [vmem:[#allocation2] sm:$0xff]
        %v537 = vld [vmem:[#allocation2 + $0x8] sm:$0xff]
        %v538 = vld [vmem:[#allocation2 + $0x10] sm:$0xff]
        %542 = vrot.lane.b32.xlu0 %v536, 111
        %v543 = vpop.permute.xlu0 %542
        %544 = vrot.lane.b32.xlu0 %v537, 111
        %v545 = vpop.permute.xlu0 %544
        %546 = vrot.lane.b32.xlu0 %v538, 111
        %v547 = vpop.permute.xlu0 %546
        %vm548 = vcmask 908288
        %v549 = vsel %vm548, %v543, %v545
        %v550 = vsel %vm548, %v545, %v547
        %v554 = vsel %vm291, %v257, 0
        %556 = vmatpush.msra.mxu0 0.0
        %557 = vmatpush.msra.mxu0 0.0
        %558 = vmatpush.msra.mxu0 0.0
        %559 = vmatpush.msra.mxu0 0.0
        %560 = vmatpush.msra.mxu0 0.0
        %561 = vmatpush.msra.mxu0 0.0
        %562 = vmatpush.msra.mxu0 0.0
        %563 = vmatpush.msra.mxu0 0.0
        %564 = vmatpush.msra.mxu0 0.0
        %565 = vmatpush.msra.mxu0 0.0
        %566 = vmatpush.msra.mxu0 0.0
        %567 = vmatpush.msra.mxu0 0.0
        %568 = vmatpush.msra.mxu0 0.0
        %569 = vmatpush.msra.mxu0 0.0
        %570 = vmatpush.msra.mxu0 0.0
        %571 = vmatpush.msra.mxu0 %v549
        %572 = vmatmul.f32.gmra.mxu0 %v554
        %v573 = vpop.f32.mrf.mxu0
        %v574 = vadd.f32 0.0, %v573
        %575 = vdwg.mxu0
        %576 = vmatpush.msra.mxu0 0.0
        %577 = vmatpush.msra.mxu0 0.0
        %578 = vmatpush.msra.mxu0 0.0
        %579 = vmatpush.msra.mxu0 0.0
        %580 = vmatpush.msra.mxu0 0.0
        %581 = vmatpush.msra.mxu0 0.0
        %582 = vmatpush.msra.mxu0 0.0
        %583 = vmatpush.msra.mxu0 0.0
        %584 = vmatpush.msra.mxu0 0.0
        %585 = vmatpush.msra.mxu0 0.0
        %586 = vmatpush.msra.mxu0 0.0
        %587 = vmatpush.msra.mxu0 0.0
        %588 = vmatpush.msra.mxu0 0.0
        %589 = vmatpush.msra.mxu0 0.0
        %590 = vmatpush.msra.mxu0 0.0
        %591 = vmatpush.msra.mxu0 %v550
        %592 = vmatmul.f32.gmra.mxu0 %v554
        %v593 = vpop.f32.mrf.mxu0
        %v594 = vadd.f32 0.0, %v593
        %595 = vdwg.mxu0
        %v596 = vadd.f32 %v534, %v574
        %v597 = vadd.f32 %v535, %v594
        %v598 = vld [vmem:[#allocation2] sm:$0xff]
        %v599 = vld [vmem:[#allocation2 + $0x8] sm:$0xff]
        %v600 = vld [vmem:[#allocation2 + $0x10] sm:$0xff]
        %601 = vrot.lane.b32.xlu0 %v385, 18
        %v602 = vpop.permute.xlu0 %601
        %603 = vrot.lane.b32.xlu0 %v386, 18
        %v604 = vpop.permute.xlu0 %603
        %vm605 = vcmask 146432
        %v606 = vsel %vm605, %v602, %v604
        %v610 = vmul.f32 %v598, %v602
        %v611 = vmul.f32 %v599, %v606
        %v612 = vmul.f32 %v600, %v604
        %616 = vrot.lane.b32.xlu0 %v610, 110
        %v617 = vpop.permute.xlu0 %616
        %618 = vrot.lane.b32.xlu0 %v611, 110
        %v619 = vpop.permute.xlu0 %618
        %620 = vrot.lane.b32.xlu0 %v612, 110
        %v621 = vpop.permute.xlu0 %620
        %vm622 = vcmask 900096
        %v623 = vsel %vm622, %v617, %v619
        %v624 = vsel %vm622, %v619, %v621
        %v628 = vsel %vm291, %v258, 0
        %630 = vmatpush.msra.mxu0 0.0
        %631 = vmatpush.msra.mxu0 0.0
        %632 = vmatpush.msra.mxu0 0.0
        %633 = vmatpush.msra.mxu0 0.0
        %634 = vmatpush.msra.mxu0 0.0
        %635 = vmatpush.msra.mxu0 0.0
        %636 = vmatpush.msra.mxu0 0.0
        %637 = vmatpush.msra.mxu0 0.0
        %638 = vmatpush.msra.mxu0 0.0
        %639 = vmatpush.msra.mxu0 0.0
        %640 = vmatpush.msra.mxu0 0.0
        %641 = vmatpush.msra.mxu0 0.0
        %642 = vmatpush.msra.mxu0 0.0
        %643 = vmatpush.msra.mxu0 0.0
        %644 = vmatpush.msra.mxu0 0.0
        %645 = vmatpush.msra.mxu0 %v623
        %646 = vmatmul.f32.gmra.mxu0 %v628
        %v647 = vpop.f32.mrf.mxu0
        %v648 = vadd.f32 0.0, %v647
        %649 = vdwg.mxu0
        %650 = vmatpush.msra.mxu0 0.0
        %651 = vmatpush.msra.mxu0 0.0
        %652 = vmatpush.msra.mxu0 0.0
        %653 = vmatpush.msra.mxu0 0.0
        %654 = vmatpush.msra.mxu0 0.0
        %655 = vmatpush.msra.mxu0 0.0
        %656 = vmatpush.msra.mxu0 0.0
        %657 = vmatpush.msra.mxu0 0.0
        %658 = vmatpush.msra.mxu0 0.0
        %659 = vmatpush.msra.mxu0 0.0
        %660 = vmatpush.msra.mxu0 0.0
        %661 = vmatpush.msra.mxu0 0.0
        %662 = vmatpush.msra.mxu0 0.0
        %663 = vmatpush.msra.mxu0 0.0
        %664 = vmatpush.msra.mxu0 0.0
        %665 = vmatpush.msra.mxu0 %v624
        %666 = vmatmul.f32.gmra.mxu0 %v628
        %v667 = vpop.f32.mrf.mxu0
        %v668 = vadd.f32 0.0, %v667
        %669 = vdwg.mxu0
        %v670 = vadd.f32 %v596, %v648
        %v671 = vadd.f32 %v597, %v668
        %v672 = vld [vmem:[#allocation2] sm:$0xff]
        %v673 = vld [vmem:[#allocation2 + $0x8] sm:$0xff]
        %v674 = vld [vmem:[#allocation2 + $0x10] sm:$0xff]
        %675 = vrot.lane.b32.xlu0 %v270, 32
        %v676 = vpop.permute.xlu0 %675
        %677 = vrot.lane.b32.xlu0 %v271, 32
        %v678 = vpop.permute.xlu0 %677
        %vm679 = vcmask 261120
        %v680 = vsel %vm679, %v676, %v678
        %v684 = vmul.f32 %v672, %v676
        %v685 = vmul.f32 %v673, %v680
        %v686 = vmul.f32 %v674, %v678
        %690 = vrot.lane.b32.xlu0 %v684, 96
        %v691 = vpop.permute.xlu0 %690
        %692 = vrot.lane.b32.xlu0 %v685, 96
        %v693 = vpop.permute.xlu0 %692
        %694 = vrot.lane.b32.xlu0 %v686, 96
        %v695 = vpop.permute.xlu0 %694
        %vm696 = vcmask 785408
        %v697 = vsel %vm696, %v691, %v693
        %v698 = vsel %vm696, %v693, %v695
        %v702 = vsel %vm291, %v259, 0
        %704 = vmatpush.msra.mxu0 0.0
        %705 = vmatpush.msra.mxu0 0.0
        %706 = vmatpush.msra.mxu0 0.0
        %707 = vmatpush.msra.mxu0 0.0
        %708 = vmatpush.msra.mxu0 0.0
        %709 = vmatpush.msra.mxu0 0.0
        %710 = vmatpush.msra.mxu0 0.0
        %711 = vmatpush.msra.mxu0 0.0
        %712 = vmatpush.msra.mxu0 0.0
        %713 = vmatpush.msra.mxu0 0.0
        %714 = vmatpush.msra.mxu0 0.0
        %715 = vmatpush.msra.mxu0 0.0
        %716 = vmatpush.msra.mxu0 0.0
        %717 = vmatpush.msra.mxu0 0.0
        %718 = vmatpush.msra.mxu0 0.0
        %719 = vmatpush.msra.mxu0 %v697
        %720 = vmatmul.f32.gmra.mxu0 %v702
        %v721 = vpop.f32.mrf.mxu0
        %v722 = vadd.f32 0.0, %v721
        %723 = vdwg.mxu0
        %724 = vmatpush.msra.mxu0 0.0
        %725 = vmatpush.msra.mxu0 0.0
        %726 = vmatpush.msra.mxu0 0.0
        %727 = vmatpush.msra.mxu0 0.0
        %728 = vmatpush.msra.mxu0 0.0
        %729 = vmatpush.msra.mxu0 0.0
        %730 = vmatpush.msra.mxu0 0.0
        %731 = vmatpush.msra.mxu0 0.0
        %732 = vmatpush.msra.mxu0 0.0
        %733 = vmatpush.msra.mxu0 0.0
        %734 = vmatpush.msra.mxu0 0.0
        %735 = vmatpush.msra.mxu0 0.0
        %736 = vmatpush.msra.mxu0 0.0
        %737 = vmatpush.msra.mxu0 0.0
        %738 = vmatpush.msra.mxu0 0.0
        %739 = vmatpush.msra.mxu0 %v698
        %740 = vmatmul.f32.gmra.mxu0 %v702
        %v741 = vpop.f32.mrf.mxu0
        %v742 = vadd.f32 0.0, %v741
        %743 = vdwg.mxu0
        %v744 = vadd.f32 %v670, %v722
        %v745 = vadd.f32 %v671, %v742
        %v746 = vld [vmem:[#allocation2] sm:$0xff]
        %v747 = vld [vmem:[#allocation2 + $0x8] sm:$0xff]
        %v748 = vld [vmem:[#allocation2 + $0x10] sm:$0xff]
        %752 = vrot.lane.b32.xlu0 %v746, 95
        %v753 = vpop.permute.xlu0 %752
        %754 = vrot.lane.b32.xlu0 %v747, 95
        %v755 = vpop.permute.xlu0 %754
        %756 = vrot.lane.b32.xlu0 %v748, 95
        %v757 = vpop.permute.xlu0 %756
        %vm758 = vcmask 777216
        %v759 = vsel %vm758, %v753, %v755
        %v760 = vsel %vm758, %v755, %v757
        %v764 = vsel %vm291, %v260, 0
        %766 = vmatpush.msra.mxu0 0.0
        %767 = vmatpush.msra.mxu0 0.0
        %768 = vmatpush.msra.mxu0 0.0
        %769 = vmatpush.msra.mxu0 0.0
        %770 = vmatpush.msra.mxu0 0.0
        %771 = vmatpush.msra.mxu0 0.0
        %772 = vmatpush.msra.mxu0 0.0
        %773 = vmatpush.msra.mxu0 0.0
        %774 = vmatpush.msra.mxu0 0.0
        %775 = vmatpush.msra.mxu0 0.0
        %776 = vmatpush.msra.mxu0 0.0
        %777 = vmatpush.msra.mxu0 0.0
        %778 = vmatpush.msra.mxu0 0.0
        %779 = vmatpush.msra.mxu0 0.0
        %780 = vmatpush.msra.mxu0 0.0
        %781 = vmatpush.msra.mxu0 %v759
        %782 = vmatmul.f32.gmra.mxu0 %v764
        %v783 = vpop.f32.mrf.mxu0
        %v784 = vadd.f32 0.0, %v783
        %785 = vdwg.mxu0
        %786 = vmatpush.msra.mxu0 0.0
        %787 = vmatpush.msra.mxu0 0.0
        %788 = vmatpush.msra.mxu0 0.0
        %789 = vmatpush.msra.mxu0 0.0
        %790 = vmatpush.msra.mxu0 0.0
        %791 = vmatpush.msra.mxu0 0.0
        %792 = vmatpush.msra.mxu0 0.0
        %793 = vmatpush.msra.mxu0 0.0
        %794 = vmatpush.msra.mxu0 0.0
        %795 = vmatpush.msra.mxu0 0.0
        %796 = vmatpush.msra.mxu0 0.0
        %797 = vmatpush.msra.mxu0 0.0
        %798 = vmatpush.msra.mxu0 0.0
        %799 = vmatpush.msra.mxu0 0.0
        %800 = vmatpush.msra.mxu0 0.0
        %801 = vmatpush.msra.mxu0 %v760
        %802 = vmatmul.f32.gmra.mxu0 %v764
        %v803 = vpop.f32.mrf.mxu0
        %v804 = vadd.f32 0.0, %v803
        %805 = vdwg.mxu0
        %v806 = vadd.f32 %v744, %v784
        %v807 = vadd.f32 %v745, %v804
        %v808 = vld [vmem:[#allocation2] sm:$0xff]
        %v809 = vld [vmem:[#allocation2 + $0x8] sm:$0xff]
        %v810 = vld [vmem:[#allocation2 + $0x10] sm:$0xff]
        %811 = vrot.lane.b32.xlu0 %v385, 34
        %v812 = vpop.permute.xlu0 %811
        %813 = vrot.lane.b32.xlu0 %v386, 34
        %v814 = vpop.permute.xlu0 %813
        %vm815 = vcmask 277504
        %v816 = vsel %vm815, %v812, %v814
        %v820 = vmul.f32 %v808, %v812
        %v821 = vmul.f32 %v809, %v816
        %v822 = vmul.f32 %v810, %v814
        %826 = vrot.lane.b32.xlu0 %v820, 94
        %v827 = vpop.permute.xlu0 %826
        %828 = vrot.lane.b32.xlu0 %v821, 94
        %v829 = vpop.permute.xlu0 %828
        %830 = vrot.lane.b32.xlu0 %v822, 94
        %v831 = vpop.permute.xlu0 %830
        %vm832 = vcmask 769024
        %v833 = vsel %vm832, %v827, %v829
        %v834 = vsel %vm832, %v829, %v831
        %v838 = vsel %vm291, %v261, 0
        %840 = vmatpush.msra.mxu0 0.0
        %841 = vmatpush.msra.mxu0 0.0
        %842 = vmatpush.msra.mxu0 0.0
        %843 = vmatpush.msra.mxu0 0.0
        %844 = vmatpush.msra.mxu0 0.0
        %845 = vmatpush.msra.mxu0 0.0
        %846 = vmatpush.msra.mxu0 0.0
        %847 = vmatpush.msra.mxu0 0.0
        %848 = vmatpush.msra.mxu0 0.0
        %849 = vmatpush.msra.mxu0 0.0
        %850 = vmatpush.msra.mxu0 0.0
        %851 = vmatpush.msra.mxu0 0.0
        %852 = vmatpush.msra.mxu0 0.0
        %853 = vmatpush.msra.mxu0 0.0
        %854 = vmatpush.msra.mxu0 0.0
        %855 = vmatpush.msra.mxu0 %v833
        %856 = vmatmul.f32.gmra.mxu0 %v838
        %v857 = vpop.f32.mrf.mxu0
        %v858 = vadd.f32 0.0, %v857
        %859 = vdwg.mxu0
        %860 = vmatpush.msra.mxu0 0.0
        %861 = vmatpush.msra.mxu0 0.0
        %862 = vmatpush.msra.mxu0 0.0
        %863 = vmatpush.msra.mxu0 0.0
        %864 = vmatpush.msra.mxu0 0.0
        %865 = vmatpush.msra.mxu0 0.0
        %866 = vmatpush.msra.mxu0 0.0
        %867 = vmatpush.msra.mxu0 0.0
        %868 = vmatpush.msra.mxu0 0.0
        %869 = vmatpush.msra.mxu0 0.0
        %870 = vmatpush.msra.mxu0 0.0
        %871 = vmatpush.msra.mxu0 0.0
        %872 = vmatpush.msra.mxu0 0.0
        %873 = vmatpush.msra.mxu0 0.0
        %874 = vmatpush.msra.mxu0 0.0
        %875 = vmatpush.msra.mxu0 %v834
        %876 = vmatmul.f32.gmra.mxu0 %v838
        %v877 = vpop.f32.mrf.mxu0
        %v878 = vadd.f32 0.0, %v877
        %879 = vdwg.mxu0
        %v880 = vadd.f32 %v806, %v858
        %v881 = vadd.f32 %v807, %v878
        %v882 = vld [vmem:[%s232] sm:$0xff]
        %884 = vset.pattern.permute.xlu0 0
        %885 = vperm.xlu0 %884, %v882
        %v886 = vpop.permute.xlu0 %885
        %v888 = vadd.f32 %v880, %v886
        %v889 = vadd.f32 %v881, %v886
        %890 = vst [vmem:[%s218] sm:$0xff] %v888
        %891 = vst [vmem:[%s218 + $0x8] sm:$0xff] %v889
        %s892 = sand.u32 %s125, 1
        %s893 = scalar_lea.sflag [#allocation4], %s892
        %s894 = sand.u32 %s125, 1
        %s895 = smul.addr %s894, 16
        %s896 = scalar_lea.vmem [#allocation3], %s895
        // Predicated region
        $region37: #{tpu_custom_call.1} parent=35 // pred_check
          %p897 = pneg %p135
        $region38: #{tpu_custom_call.1} parent=35 // pred_check_branch
          %899 = sbr.rel (%p897) target = $region40
        $region39: #{tpu_custom_call.1} parent=35 // pred_region
          %901 = vsyncadd %s893, 0
          %s902 = smul.addr %s18, 2
          %s903 = smul.addr %s902, 8
          %s904 = scalar_lea.hbm %s4, %s903
          %s906 = sshll.u32 %s896, 4
          %s907 = int_to_ptr.vmem [resolvable:$true] %s906
          %s908 = sshll.u32 %s904, 4
          %s909 = int_to_ptr.hbm [resolvable:$true] %s908
          %911 = dma.vmem_to_hbm [thread:$0]  %s907, 256, %s909, %s893
        $region40: #{tpu_custom_call.1} parent=35 // pred_fallthru
          _
      $region36: #{tpu_custom_call.1} parent=5 // pred_fallthru
        _
      %p912 = scmp.le.s32.totalorder 2, %s13
      // Predicated region
      $region41: #{tpu_custom_call.1} parent=5 // pred_check
        %p913 = pneg %p912
      $region42: #{tpu_custom_call.1} parent=5 // pred_check_branch
        %915 = sbr.rel (%p913) target = $region44
      $region43: #{tpu_custom_call.1} parent=5 // pred_region
        %s916 = ssub.s32 %s13, 2
        // Predicated region
        $region45: #{tpu_custom_call.1} parent=43 // pred_check
          %p917 = pneg %p141
        $region46: #{tpu_custom_call.1} parent=43 // pred_check_branch
          %919 = sbr.rel (%p917) target = $region48
        $region47: #{tpu_custom_call.1} parent=43 // pred_region
          %s920 = sand.u32 %s126, 1
          %s921 = scalar_lea.sflag [#allocation4], %s920
          %s922 = sand.u32 %s126, 1
          %s923 = smul.addr %s922, 16
          %s924 = scalar_lea.vmem [#allocation3], %s923
          %926 = dma.done %s921, 256
        $region48: #{tpu_custom_call.1} parent=43 // pred_fallthru
          _
      $region44: #{tpu_custom_call.1} parent=5 // pred_fallthru
        _
    $region6: #{tpu_custom_call.1} parent=1 // loop_footer
      %s17 = sadd.s32 1, %s13
    $region7: #{tpu_custom_call.1} parent=1 // loop_footer_branch
      %12 = sbr.rel target = $region3
    $region8: #{tpu_custom_call.1} parent=1 // loop_exit
      _
    %927 = vsyncpa [#allocation4], 1
    %s928 = scalar_lea.sflag [#allocation4], 1
    %929 = vsyncpa %s928, 1

</llo_original>
